<compile_context>
chip_gen: v5e
topology: v5e:2x2
jax: 0.10.0
libtpu: 0.0.40
codegen_flags: <defaults>
</compile_context>

<pallas_src>
import math

import jax
import jax.numpy as jnp
from jax.experimental import pallas as pl
from jax.experimental.pallas import tpu as pltpu


def _round_up(x, m):
    return ((x + m - 1) // m) * m


def _tile_caps():
    """Generation-aware tile caps + scoped-VMEM budget."""
    try:
        vmem_cap = int(pltpu.get_tpu_info().vmem_capacity_bytes)
    except Exception:
        vmem_cap = 64 << 20  # conservative fallback (v7x-sized physical VMEM)
    if vmem_cap >= (128 << 20):  # v5e / v6e: 128 MiB physical VMEM
        caps = dict(tm_max=512, tn_max=1024, tk_max=2048)
    else:                        # v7x: 64 MiB per TensorCore
        caps = dict(tm_max=512, tn_max=512, tk_max=1024)
    # Leave headroom: never claim all of physical VMEM (v7x), but use most of
    # the 128 MiB on v5e/v6e.
    caps["vmem_limit_bytes"] = min(vmem_cap * 3 // 4, 96 << 20)
    return caps


def _pick_tn(N, tn_max):
    return min(tn_max, _round_up(N, 128))


def _pick_tm(M, tm_max, sublane):
    m_aligned = _round_up(M, sublane)
    if m_aligned <= tm_max:
        return m_aligned  # single M block: only sublane-alignment padding
    # Search sublane multiples (>=128) for the tile minimizing M padding,
    # preferring the largest tile on ties (fewer weight re-reads / grid steps).
    lo = max(128, sublane)
    best_tm = tm_max
    best_pad = _round_up(M, tm_max)
    tm = tm_max
    while tm >= lo:
        pad = _round_up(M, tm)
        if pad < best_pad:
            best_pad, best_tm = pad, tm
        tm -= sublane
    return best_tm


def _matmul_bias_kernel_f32(x_ref, wt_ref, b_ref, o_ref):
    # f32 output: the output block is resident across the K axis, so accumulate
    # directly into it (no scratch, no epilogue copy).
    k = pl.program_id(2)

    @pl.when(k == 0)
    def _():
        o_ref[...] = jnp.zeros_like(o_ref)

    o_ref[...] += jnp.dot(
        x_ref[...], wt_ref[...], preferred_element_type=jnp.float32
    )

    @pl.when(k == pl.num_programs(2) - 1)
    def _():
        o_ref[...] += b_ref[...].astype(jnp.float32)


def _matmul_bias_kernel_acc(x_ref, wt_ref, b_ref, o_ref, acc_ref):
    # Low-precision output: keep a resident f32 VMEM accumulator.
    k = pl.program_id(2)

    @pl.when(k == 0)
    def _():
        acc_ref[...] = jnp.zeros_like(acc_ref)

    acc_ref[...] += jnp.dot(
        x_ref[...], wt_ref[...], preferred_element_type=jnp.float32
    )

    @pl.when(k == pl.num_programs(2) - 1)
    def _():
        o_ref[...] = (acc_ref[...] + b_ref[...].astype(jnp.float32)).astype(
            o_ref.dtype
        )


def init_params(key, dim, vocab_dim, dtype=jnp.float32):
    """Matches the module init:
    weight: kaiming_uniform_(a=sqrt(5)) on (dim, vocab_dim)
            -> U(-1/sqrt(vocab_dim), 1/sqrt(vocab_dim))
    bias:   nn.Linear default -> U(-1/sqrt(vocab_dim), 1/sqrt(vocab_dim))
    """
    kw, kb = jax.random.split(key)
    bound = 1.0 / math.sqrt(vocab_dim)
    weight = jax.random.uniform(
        kw, (dim, vocab_dim), jnp.float32, minval=-bound, maxval=bound
    ).astype(dtype)
    bias = jax.random.uniform(
        kb, (dim,), jnp.float32, minval=-bound, maxval=bound
    ).astype(dtype)
    return weight, bias


def prepare_params(weight, bias):
    """One-time layout prep: transpose + zero-pad weight/bias to tile multiples.

    Done once at init so the (potentially vocab-sized) weight is never padded
    or transposed per forward call.  Returns the dict consumed by
    embedding_layer_forward.
    """
    dim, vocab_dim = weight.shape  # (N, K)
    caps = _tile_caps()
    tn = _pick_tn(dim, caps["tn_max"])
    tk = min(caps["tk_max"], _round_up(vocab_dim, 128))
    K_pad = _round_up(vocab_dim, tk)
    N_pad = _round_up(dim, tn)

    wt = weight.T  # (K, N) one-time transpose
    wt_p = jnp.pad(wt, ((0, K_pad - vocab_dim), (0, N_pad - dim)))
    b_p = jnp.pad(bias.reshape(1, dim), ((0, 0), (0, N_pad - dim)))

    return dict(
        wt=wt_p,                       # (K_pad, N_pad), pre-padded
        bias=b_p,                      # (1, N_pad), pre-padded
        K=vocab_dim,
        N=dim,
        tn=tn,
        tk=tk,
        tm_max=caps["tm_max"],
        vmem_limit_bytes=caps["vmem_limit_bytes"],
    )


def embedding_layer_forward(x, params):
    """y = x @ W^T + bias, matching nn.Linear(vocab_dim, dim).forward.

    x: (..., vocab_dim); params from prepare_params().  Returns (..., dim).
    """
    K, N = params["K"], params["N"]
    tn, tk = params["tn"], params["tk"]
    wt_p, b_p = params["wt"], params["bias"]
    K_pad, N_pad = wt_p.shape

    *lead, Kx = x.shape
    assert Kx == K, f"vocab_dim mismatch: {Kx} vs {K}"
    M = int(math.prod(lead)) if lead else 1
    x2d = x.reshape(M, K)

    out_dtype = x.dtype
    sublane = 16 if out_dtype == jnp.bfloat16 else 8
    tm = _pick_tm(M, params["tm_max"], sublane)
    M_pad = _round_up(M, tm)

    # Only the (small) activation gets a per-call pad; zeros are matmul-neutral.
    if (M_pad, K_pad) != (M, K):
        x2d = jnp.pad(x2d, ((0, M_pad - M), (0, K_pad - K)))

    grid_m = M_pad // tm
    grid_n = N_pad // tn
    grid_k = K_pad // tk

    # Megacore: keep >= 2 parallel blocks so v7x's two TensorCores both work.
    if grid_m == 1 and grid_n == 1 and tn >= 256 and tn % 256 == 0:
        tn //= 2
        grid_n = N_pad // tn

    # Kernel / scratch choice: f32 outputs accumulate directly into o_ref.
    if out_dtype == jnp.float32:
        kernel = _matmul_bias_kernel_f32
        scratch_shapes = []
    else:
        kernel = _matmul_bias_kernel_acc
        scratch_shapes = [pltpu.VMEM((tm, tn), jnp.float32)]

    # Small-M (decode-like) shapes are HBM-bound on streaming W^T: buffer deeper.
    wt_spec_kwargs = {}
    if tm <= 64 and grid_k >= 2:
        wt_spec_kwargs = dict(pipeline_mode=pl.Buffered(3))
    wt_spec = pl.BlockSpec((tk, tn), lambda i, j, k: (k, j), **wt_spec_kwargs)

    x_bytes = M_pad * K_pad * x2d.dtype.itemsize
    wt_bytes = K_pad * N_pad * wt_p.dtype.itemsize
    out_bytes = M_pad * N_pad * jnp.dtype(out_dtype).itemsize
    cost = pl.CostEstimate(
        flops=2 * M_pad * N_pad * K_pad,
        transcendentals=0,
        bytes_accessed=(
            x_bytes * grid_n + wt_bytes * grid_m + out_bytes
            + N_pad * b_p.dtype.itemsize
        ),
    )

    out = pl.pallas_call(
        kernel,
        out_shape=jax.ShapeDtypeStruct((M_pad, N_pad), out_dtype),
        grid_spec=pltpu.PrefetchScalarGridSpec(
            num_scalar_prefetch=0,
            grid=(grid_m, grid_n, grid_k),
            in_specs=[
                pl.BlockSpec((tm, tk), lambda i, j, k: (i, k)),   # x tile
                wt_spec,                                          # W^T tile
                pl.BlockSpec((1, tn), lambda i, j, k: (0, j)),    # bias tile
            ],
            out_specs=pl.BlockSpec((tm, tn), lambda i, j, k: (i, j)),
            scratch_shapes=scratch_shapes,
        ),
        compiler_params=pltpu.CompilerParams(
            dimension_semantics=("parallel", "parallel", "arbitrary"),
            vmem_limit_bytes=params["vmem_limit_bytes"],
        ),
        cost_estimate=cost,
    )(x2d, wt_p, b_p)

    out = out[:M, :N]
    return out.reshape(*lead, N)


if __name__ == "__main__":
    key = jax.random.PRNGKey(0)
    batch, seq, vocab_dim, dim = 2, 8, 32, 64

    kx, kp = jax.random.split(key)
    x = jax.random.normal(kx, (batch, seq, vocab_dim), jnp.float32)
    weight, bias = init_params(kp, dim, vocab_dim, dtype=jnp.float32)
    params = prepare_params(weight, bias)

    # f32 path (direct output accumulation, no scratch)
    y = embedding_layer_forward(x, params)
    y = jax.block_until_ready(y)

    y_ref = x @ weight.T + bias
    assert y.shape == (batch, seq, dim)
    assert jnp.allclose(y, y_ref, atol=1e-5, rtol=1e-5)

    # bf16 path (f32 VMEM accumulator, 16-sublane M tiles) -- the recommended
    # production dtype for MXU peak / half the weight HBM traffic.
    xb = x.astype(jnp.bfloat16)
    params_b = prepare_params(
        weight.astype(jnp.bfloat16), bias.astype(jnp.bfloat16)
    )
    yb = jax.block_until_ready(embedding_layer_forward(xb, params_b))
    assert yb.shape == (batch, seq, dim)
    assert jnp.allclose(yb.astype(jnp.float32), y_ref, atol=5e-2, rtol=5e-2)

    print("KERNEL_OK")
</pallas_src>

<mosaic_0001>
module attributes {stable_mosaic.version = 11 : i64} {
  func.func @_matmul_bias_kernel_f32(%arg0: i32, %arg1: i32, %arg2: i32, %arg3: memref<16x128xf32, #tpu.memory_space<vmem>>, %arg4: memref<128x128xf32, #tpu.memory_space<vmem>>, %arg5: memref<1x128xf32, #tpu.memory_space<vmem>>, %arg6: memref<16x128xf32, #tpu.memory_space<vmem>>) attributes {dimension_semantics = [#tpu.dimension_semantics<parallel>, #tpu.dimension_semantics<parallel>, #tpu.dimension_semantics<arbitrary>], iteration_bounds = array<i64: 1, 1, 1>, scalar_prefetch = 0 : i64, scratch_operands = 0 : i64, tpu.core_type = #tpu.core_type<tc>, window_params = [{transform_indices = @transform_0, window_bounds = array<i64: 16, 128>}, {transform_indices = @transform_1, window_bounds = array<i64: 128, 128>}, {transform_indices = @transform_2, window_bounds = array<i64: 1, 128>}, {transform_indices = @transform_3, window_bounds = array<i64: 16, 128>}]} {
    %c0_i32 = arith.constant 0 : i32
    %0 = arith.cmpi eq, %arg2, %c0_i32 : i32
    %1 = arith.extui %0 : i1 to i32
    %c0_i32_0 = arith.constant 0 : i32
    %2 = arith.cmpi ne, %1, %c0_i32_0 : i32
    scf.if %2 {
      %cst_10 = arith.constant 0.000000e+00 : f32
      %12 = vector.broadcast %cst_10 : f32 to vector<16x128xf32>
      %c0_11 = arith.constant 0 : index
      %c0_12 = arith.constant 0 : index
      %13 = vector.load %arg6[%c0_11, %c0_12] : memref<16x128xf32, #tpu.memory_space<vmem>>, vector<16x128xf32>
      tpu.vector_store %arg6[%c0_11, %c0_12], %12 {strides = array<i32>} : memref<16x128xf32, #tpu.memory_space<vmem>>, vector<16x128xf32>,
    } else {
    }
    %c0 = arith.constant 0 : index
    %c0_1 = arith.constant 0 : index
    %3 = vector.load %arg6[%c0, %c0_1] : memref<16x128xf32, #tpu.memory_space<vmem>>, vector<16x128xf32>
    %c0_2 = arith.constant 0 : index
    %c0_3 = arith.constant 0 : index
    %4 = vector.load %arg3[%c0_2, %c0_3] : memref<16x128xf32, #tpu.memory_space<vmem>>, vector<16x128xf32>
    %c0_4 = arith.constant 0 : index
    %c0_5 = arith.constant 0 : index
    %5 = vector.load %arg4[%c0_4, %c0_5] : memref<128x128xf32, #tpu.memory_space<vmem>>, vector<128x128xf32>
    %cst = arith.constant dense<0.000000e+00> : vector<16x128xf32>
    %6 = tpu.matmul %4, %5, %cst {dimension_numbers = #tpu.dot_dimension_numbers<[1], [0], [0], [1], [0, 0, 1, 1], [], []>} : vector<16x128xf32>, vector<128x128xf32>, vector<16x128xf32> -> vector<16x128xf32>
    %7 = arith.addf %3, %6 : vector<16x128xf32>
    %c0_6 = arith.constant 0 : index
    %c0_7 = arith.constant 0 : index
    %8 = vector.load %arg6[%c0_6, %c0_7] : memref<16x128xf32, #tpu.memory_space<vmem>>, vector<16x128xf32>
    tpu.vector_store %arg6[%c0_6, %c0_7], %7 {strides = array<i32>} : memref<16x128xf32, #tpu.memory_space<vmem>>, vector<16x128xf32>,
    %c0_i32_8 = arith.constant 0 : i32
    %9 = arith.cmpi eq, %arg2, %c0_i32_8 : i32
    %10 = arith.extui %9 : i1 to i32
    %c0_i32_9 = arith.constant 0 : i32
    %11 = arith.cmpi ne, %10, %c0_i32_9 : i32
    scf.if %11 {
      %c0_10 = arith.constant 0 : index
      %c0_11 = arith.constant 0 : index
      %12 = vector.load %arg6[%c0_10, %c0_11] : memref<16x128xf32, #tpu.memory_space<vmem>>, vector<16x128xf32>
      %c0_12 = arith.constant 0 : index
      %c0_13 = arith.constant 0 : index
      %13 = vector.load %arg5[%c0_12, %c0_13] : memref<1x128xf32, #tpu.memory_space<vmem>>, vector<1x128xf32>
      %14 = vector.broadcast %13 : vector<1x128xf32> to vector<16x128xf32>
      %15 = arith.addf %12, %14 : vector<16x128xf32>
      %c0_14 = arith.constant 0 : index
      %c0_15 = arith.constant 0 : index
      %16 = vector.load %arg6[%c0_14, %c0_15] : memref<16x128xf32, #tpu.memory_space<vmem>>, vector<16x128xf32>
      tpu.vector_store %arg6[%c0_14, %c0_15], %15 {strides = array<i32>} : memref<16x128xf32, #tpu.memory_space<vmem>>, vector<16x128xf32>,
    } else {
    }
    return
  }
  func.func @transform_0(%arg0: i32, %arg1: i32, %arg2: i32) -> (i32, i32) {
    %c0_i32 = arith.constant 0 : i32
    return %arg0, %arg2 : i32, i32
  }
  func.func @transform_1(%arg0: i32, %arg1: i32, %arg2: i32) -> (i32, i32) {
    %c0_i32 = arith.constant 0 : i32
    return %arg2, %arg1 : i32, i32
  }
  func.func @transform_2(%arg0: i32, %arg1: i32, %arg2: i32) -> (i32, i32) {
    %c0_i32 = arith.constant 0 : i32
    %c0_i32_0 = arith.constant 0 : i32
    return %c0_i32, %arg1 : i32, i32
  }
  func.func @transform_3(%arg0: i32, %arg1: i32, %arg2: i32) -> (i32, i32) {
    %c0_i32 = arith.constant 0 : i32
    return %arg0, %arg1 : i32, i32
  }
}

</mosaic_0001>

<llo_original>
// kernel: tpu_custom_call.1
$region0: #{tpu_custom_call.1}
  #allocation0 [shape = 'u32[]', space=smem, size = 0x4, offset = 0x4, fixed_abs, tag = 'smem constant byte address 0x4 - core index']
  #allocation1 [shape = 'u32[72,128]{1,0:T(1,128)}', space=vmem, size = 0x9000, scoped, tag = 'internal scratch']
  %s0 = inlined_call_operand.hbm [shape: f32[16,128], index: 0, kind: input, shape index: {}]
  %s1 = inlined_call_operand.hbm [shape: f32[128,128], index: 1, kind: input, shape index: {}]
  %s2 = inlined_call_operand.vmem [shape: f32[1,128], index: 2, kind: input, shape index: {}]
  %s3 = inlined_call_operand.hbm [shape: f32[16,128], index: 3, kind: output, shape index: {}]
  %s4 = sld [smem:[#allocation0]]
  $region38: #{tpu_custom_call.1} parent=0
    _
  %s6 = ssub.s32 1, %s4
  %s7 = scalar_select 0, %s6, %s4
  $region1: #{tpu_custom_call.1} parent=0
    #allocation2 [shape = 'u8[8192]{0}', space=vmem, size = 0x2000, scoped, tag = 'input window, operand 0, single buffered']
    #allocation3 [shape = 's32[1]{0}', space=sflag, size = 0x4, scoped, tag = 'scoped memory for tpu_custom_call.1']
    #allocation4 [shape = 's32[1]{0}', space=sflag, size = 0x4, scoped, tag = 'scoped memory for tpu_custom_call.1']
    #allocation5 [shape = 'u8[65536]{0}', space=vmem, size = 0x10000, scoped, tag = 'input window, operand 1, single buffered']
    #allocation6 [shape = 's32[1]{0}', space=sflag, size = 0x4, scoped, tag = 'scoped memory for tpu_custom_call.1']
    #allocation7 [shape = 'u8[8192]{0}', space=vmem, size = 0x2000, scoped, tag = 'output window, operand 0, single buffered']
    %8 = vsyncpa [#allocation3], 0
    %9 = vsyncpa [#allocation6], 0
    %10 = vsyncpa [#allocation4], 0
    // Predicated region
    $region2: #{tpu_custom_call.1} parent=1 // pred_check
      _
    $region3: #{tpu_custom_call.1} parent=1 // pred_check_branch
      %12 = sbr.rel (0) target = $region5
    $region4: #{tpu_custom_call.1} parent=1 // pred_region
      %14 = vsyncadd [#allocation3], 0
      %s15 = sshll.u32 %s0, 4
      %s16 = int_to_ptr.hbm [resolvable:$true] %s15
      %s17 = sshll.u32 [#allocation2], 4
      %s18 = int_to_ptr.vmem [resolvable:$true] %s17
      %23 = dma.hbm_to_vmem [thread:$0]  %s16, 256, %s18, [#allocation3], 128, 128, 8
    $region5: #{tpu_custom_call.1} parent=1 // pred_fallthru
      _
    // Predicated region
    $region6: #{tpu_custom_call.1} parent=1 // pred_check
      _
    $region7: #{tpu_custom_call.1} parent=1 // pred_check_branch
      %25 = sbr.rel (0) target = $region9
    $region8: #{tpu_custom_call.1} parent=1 // pred_region
      %27 = vsyncadd [#allocation6], 0
      %s28 = sshll.u32 %s1, 4
      %s29 = int_to_ptr.hbm [resolvable:$true] %s28
      %s30 = sshll.u32 [#allocation5], 4
      %s31 = int_to_ptr.vmem [resolvable:$true] %s30
      %36 = dma.hbm_to_vmem [thread:$0]  %s29, 2048, %s31, [#allocation6], 128, 128, 8
    $region9: #{tpu_custom_call.1} parent=1 // pred_fallthru
      _
    // Predicated region
    $region10: #{tpu_custom_call.1} parent=1 // pred_check
      _
    $region11: #{tpu_custom_call.1} parent=1 // pred_check_branch
      %38 = sbr.rel (0) target = $region13
    $region12: #{tpu_custom_call.1} parent=1 // pred_region
      _
    $region13: #{tpu_custom_call.1} parent=1 // pred_fallthru
      _
    // Predicated region
    $region14: #{tpu_custom_call.1} parent=1 // pred_check
      _
    $region15: #{tpu_custom_call.1} parent=1 // pred_check_branch
      %40 = sbr.rel (0) target = $region17
    $region16: #{tpu_custom_call.1} parent=1 // pred_region
      %42 = dma.done [#allocation3], 256
    $region17: #{tpu_custom_call.1} parent=1 // pred_fallthru
      _
    // Predicated region
    $region18: #{tpu_custom_call.1} parent=1 // pred_check
      _
    $region19: #{tpu_custom_call.1} parent=1 // pred_check_branch
      %44 = sbr.rel (0) target = $region21
    $region20: #{tpu_custom_call.1} parent=1 // pred_region
      %46 = dma.done [#allocation6], 2048
    $region21: #{tpu_custom_call.1} parent=1 // pred_fallthru
      _
    %p47 = scmp.eq.s32.totalorder 0, 0
    // Predicated region
    $region22: #{tpu_custom_call.1} parent=1 // pred_check
      %p48 = pneg %p47
    $region23: #{tpu_custom_call.1} parent=1 // pred_check_branch
      %50 = sbr.rel (%p48) target = $region25
    $region24: #{tpu_custom_call.1} parent=1 // pred_region
      %51 = vst [vmem:[#allocation7] sm:$0xff] 0.0
      %52 = vst [vmem:[#allocation7 + $0x8] sm:$0xff] 0.0
    $region25: #{tpu_custom_call.1} parent=1 // pred_fallthru
      _
    %v53 = vld [vmem:[#allocation7] sm:$0xff]
    %v54 = vld [vmem:[#allocation7 + $0x8] sm:$0xff]
    %v55 = vld [vmem:[#allocation2] sm:$0xff]
    %v56 = vld [vmem:[#allocation2 + $0x8] sm:$0xff]
    %v57 = vld [vmem:[#allocation5] sm:$0xff]
    %v58 = vld [vmem:[#allocation5 + $0x8] sm:$0xff]
    %v59 = vld [vmem:[#allocation5 + $0x10] sm:$0xff]
    %v60 = vld [vmem:[#allocation5 + $0x18] sm:$0xff]
    %v61 = vld [vmem:[#allocation5 + $0x20] sm:$0xff]
    %v62 = vld [vmem:[#allocation5 + $0x28] sm:$0xff]
    %v63 = vld [vmem:[#allocation5 + $0x30] sm:$0xff]
    %v64 = vld [vmem:[#allocation5 + $0x38] sm:$0xff]
    %v65 = vld [vmem:[#allocation5 + $0x40] sm:$0xff]
    %v66 = vld [vmem:[#allocation5 + $0x48] sm:$0xff]
    %v67 = vld [vmem:[#allocation5 + $0x50] sm:$0xff]
    %v68 = vld [vmem:[#allocation5 + $0x58] sm:$0xff]
    %v69 = vld [vmem:[#allocation5 + $0x60] sm:$0xff]
    %v70 = vld [vmem:[#allocation5 + $0x68] sm:$0xff]
    %v71 = vld [vmem:[#allocation5 + $0x70] sm:$0xff]
    %v72 = vld [vmem:[#allocation5 + $0x78] sm:$0xff]
    %73 = vmatpush.msra.mxu0 %v72
    %74 = vmatpush.msra.mxu0 %v71
    %75 = vmatpush.msra.mxu0 %v70
    %76 = vmatpush.msra.mxu0 %v69
    %77 = vmatpush.msra.mxu0 %v68
    %78 = vmatpush.msra.mxu0 %v67
    %79 = vmatpush.msra.mxu0 %v66
    %80 = vmatpush.msra.mxu0 %v65
    %81 = vmatpush.msra.mxu0 %v64
    %82 = vmatpush.msra.mxu0 %v63
    %83 = vmatpush.msra.mxu0 %v62
    %84 = vmatpush.msra.mxu0 %v61
    %85 = vmatpush.msra.mxu0 %v60
    %86 = vmatpush.msra.mxu0 %v59
    %87 = vmatpush.msra.mxu0 %v58
    %88 = vmatpush.msra.mxu0 %v57
    %89 = vmatmul.f32.gmra.mxu0 %v55
    %v90 = vpop.f32.mrf.mxu0
    %v91 = vadd.f32 0.0, %v90
    %92 = vmatmul.f32.gmra.mxu0 %v56
    %v93 = vpop.f32.mrf.mxu0
    %v94 = vadd.f32 0.0, %v93
    %95 = vdwg.mxu0
    %v96 = vadd.f32 %v53, %v91
    %v97 = vadd.f32 %v54, %v94
    %98 = vst [vmem:[#allocation7] sm:$0xff] %v96
    %99 = vst [vmem:[#allocation7 + $0x8] sm:$0xff] %v97
    // Predicated region
    $region26: #{tpu_custom_call.1} parent=1 // pred_check
      %p100 = pneg %p47
    $region27: #{tpu_custom_call.1} parent=1 // pred_check_branch
      %102 = sbr.rel (%p100) target = $region29
    $region28: #{tpu_custom_call.1} parent=1 // pred_region
      %v103 = vld [vmem:[#allocation7] sm:$0xff]
      %v104 = vld [vmem:[#allocation7 + $0x8] sm:$0xff]
      %v105 = vld [vmem:[%s2] sm:$0x1]
      %v107 = vperm.slane %v105, 0
      %v109 = vadd.f32 %v103, %v107
      %v110 = vadd.f32 %v104, %v107
      %111 = vst [vmem:[#allocation7] sm:$0xff] %v109
      %112 = vst [vmem:[#allocation7 + $0x8] sm:$0xff] %v110
    $region29: #{tpu_custom_call.1} parent=1 // pred_fallthru
      _
    // Predicated region
    $region30: #{tpu_custom_call.1} parent=1 // pred_check
      _
    $region31: #{tpu_custom_call.1} parent=1 // pred_check_branch
      %114 = sbr.rel (0) target = $region33
    $region32: #{tpu_custom_call.1} parent=1 // pred_region
      %116 = vsyncadd [#allocation4], 0
      %s117 = sshll.u32 [#allocation7], 4
      %s118 = int_to_ptr.vmem [resolvable:$true] %s117
      %s119 = sshll.u32 %s3, 4
      %s120 = int_to_ptr.hbm [resolvable:$true] %s119
      %125 = dma.vmem_to_hbm [thread:$0]  %s118, 256, %s120, [#allocation4], 128, 128, 8
    $region33: #{tpu_custom_call.1} parent=1 // pred_fallthru
      _
    // Predicated region
    $region34: #{tpu_custom_call.1} parent=1 // pred_check
      _
    $region35: #{tpu_custom_call.1} parent=1 // pred_check_branch
      %127 = sbr.rel (0) target = $region37
    $region36: #{tpu_custom_call.1} parent=1 // pred_region
      %129 = dma.done [#allocation4], 256
    $region37: #{tpu_custom_call.1} parent=1 // pred_fallthru
      _
    %130 = vsyncpa [#allocation3], 1
    %131 = vsyncpa [#allocation6], 1
    %132 = vsyncpa [#allocation4], 1

</llo_original>
